<compile_context>
chip_gen: v5e
topology: v5e:2x2
jax: 0.10.0
libtpu: 0.0.40
codegen_flags: <defaults>
</compile_context>

<pallas_src>
import functools

import jax
import jax.numpy as jnp
import numpy as np
from jax.experimental import pallas as pl
from jax.experimental.pallas import tpu as pltpu


def _gradient_loss_kernel(x_ref, y_ref, mask_ref, out_ref, acc_ref, *, h, w, scale):
    i = pl.program_id(0)
    hw = h * w

    # d = x - y, upcast to f32 for accumulation.
    d = x_ref[...].astype(jnp.float32) - y_ref[...].astype(jnp.float32)

    # Flat (lane-dense) finite differences (cyclic roll; bad positions masked):
    #   d_right[:, j] = d[:, j + 1]   (row-crossing / wrap -> last column mask)
    #   d_down [:, j] = d[:, j + w]   (wrap -> last row mask)
    d_right = pltpu.roll(d, shift=hw - 1, axis=1)
    d_down = pltpu.roll(d, shift=hw - w, axis=1)

    mdx = mask_ref[0:1, :]  # (1, hw) f32: 0.0 on the last column, else 1.0
    mdy = mask_ref[1:2, :]  # (1, hw) f32: 0.0 on the last row,    else 1.0

    dxd = (d_right - d) * mdx
    dyd = (d_down - d) * mdy

    # One fused reduction per tile.
    partial = jnp.sum(jnp.abs(dxd) + jnp.abs(dyd))

    @pl.when(i == 0)
    def _():
        acc_ref[0, 0] = jnp.float32(0.0)

    acc_ref[0, 0] += partial

    @pl.when(i == pl.num_programs(0) - 1)
    def _():
        out_ref[0, 0] = acc_ref[0, 0] * jnp.float32(scale)


def gradient_loss(x, y):
    """x, y: [b, c, h, w] -> scalar f32 (matches GradientLoss.forward)."""
    assert x.shape == y.shape
    b, c, h, w = x.shape
    n = b * c
    hw = h * w

    # Lane-dense layout: each image becomes one row of h*w elements.
    xf = x.reshape(n, hw)
    yf = y.reshape(n, hw)

    # Precomputed multiply-masks (constant block; its block index never changes
    # so the pipeline fetches it once).
    col = np.arange(hw) % w
    mdx = (col != (w - 1)).astype(np.float32)
    mdy = (np.arange(hw) < (h - 1) * w).astype(np.float32)
    masks = jnp.asarray(np.stack([mdx, mdy], axis=0))  # (2, hw) f32

    # Tile over N = b*c: ~1 MiB of f32 per tile keeps
    #   2 inputs x 2 pipeline buffers + in-kernel f32 temporaries
    # well under the scoped-VMEM defaults (16 MiB v5e, 32 MiB v6e/v7x).
    tile_n = ((1 << 20) // (hw * 4)) // 8 * 8
    tile_n = int(max(8, min(tile_n, 1024)))
    n_ceil8 = ((n + 7) // 8) * 8
    tile_n = min(tile_n, n_ceil8)
    n_pad = ((n + tile_n - 1) // tile_n) * tile_n
    if n_pad != n:
        # Zero-padded images give d == 0 everywhere -> contribute 0 to the sum.
        xf = jnp.pad(xf, ((0, n_pad - n), (0, 0)))
        yf = jnp.pad(yf, ((0, n_pad - n), (0, 0)))
    grid = (n_pad // tile_n,)

    # PyTorch: (L1Loss(dx) + L1Loss(dy)) / 2, each a mean over n*h*w elements.
    scale = float(0.5 / (n * h * w))

    kernel = functools.partial(_gradient_loss_kernel, h=h, w=w, scale=scale)

    itemsize = jnp.dtype(x.dtype).itemsize
    cost = pl.CostEstimate(
        flops=8 * n * hw,
        transcendentals=0,
        bytes_accessed=2 * n * hw * itemsize + 2 * hw * 4 + 4,
    )

    out = pl.pallas_call(
        kernel,
        out_shape=jax.ShapeDtypeStruct((1, 1), jnp.float32),
        grid_spec=pltpu.PrefetchScalarGridSpec(
            num_scalar_prefetch=0,
            grid=grid,
            in_specs=[
                pl.BlockSpec((tile_n, hw), lambda i: (i, 0)),
                pl.BlockSpec((tile_n, hw), lambda i: (i, 0)),
                pl.BlockSpec((2, hw), lambda i: (0, 0)),
            ],
            out_specs=pl.BlockSpec(
                (1, 1), lambda i: (0, 0), memory_space=pltpu.MemorySpace.SMEM
            ),
            scratch_shapes=[pltpu.SMEM((1, 1), jnp.float32)],
        ),
        compiler_params=pltpu.CompilerParams(
            # Shared scalar accumulator => reduction axis must be "arbitrary".
            dimension_semantics=("arbitrary",),
        ),
        cost_estimate=cost,
    )(xf, yf, masks)
    return out[0, 0]


def _reference_loss(x, y):
    # Pure-JAX replica of the PyTorch module for a correctness check.
    def grads(img):
        dx = jnp.pad(img[..., :, 1:] - img[..., :, :-1],
                     ((0, 0), (0, 0), (0, 0), (0, 1)))
        dy = jnp.pad(img[..., 1:, :] - img[..., :-1, :],
                     ((0, 0), (0, 0), (0, 1), (0, 0)))
        return dx, dy

    xdx, xdy = grads(x)
    ydx, ydy = grads(y)
    return (jnp.mean(jnp.abs(xdx - ydx)) + jnp.mean(jnp.abs(xdy - ydy))) / 2.0


if __name__ == "__main__":
    key = jax.random.PRNGKey(0)
    kx, ky = jax.random.split(key)
    shape = (2, 4, 16, 16)  # [b, c, h, w]
    x = jax.random.normal(kx, shape, dtype=jnp.float32)
    y = jax.random.normal(ky, shape, dtype=jnp.float32)

    loss = jax.block_until_ready(gradient_loss(x, y))
    ref = jax.block_until_ready(_reference_loss(x, y))

    assert jnp.allclose(loss, ref, atol=1e-5, rtol=1e-5), (loss, ref)
    print("KERNEL_OK")
</pallas_src>

<mosaic_0001>
module attributes {stable_mosaic.version = 11 : i64} {
  func.func @_gradient_loss_kernel(%arg0: i32, %arg1: memref<8x256xf32, #tpu.memory_space<vmem>>, %arg2: memref<8x256xf32, #tpu.memory_space<vmem>>, %arg3: memref<2x256xf32, #tpu.memory_space<vmem>>, %arg4: memref<1x1xf32, #tpu.memory_space<smem>>, %arg5: memref<1x1xf32, #tpu.memory_space<smem>>) attributes {dimension_semantics = [#tpu.dimension_semantics<arbitrary>], iteration_bounds = array<i64: 1>, scalar_prefetch = 0 : i64, scratch_operands = 1 : i64, tpu.core_type = #tpu.core_type<tc>, window_params = [{transform_indices = @transform_0, window_bounds = array<i64: 8, 256>}, {transform_indices = @transform_1, window_bounds = array<i64: 8, 256>}, {pipeline_mode = #tpu.pipeline_mode<synchronous>, transform_indices = @transform_2, window_bounds = array<i64: 2, 256>}, {transform_indices = @transform_3, window_bounds = array<i64: 1, 1>}]} {
    %c0 = arith.constant 0 : index
    %c0_0 = arith.constant 0 : index
    %0 = vector.load %arg1[%c0, %c0_0] : memref<8x256xf32, #tpu.memory_space<vmem>>, vector<8x256xf32>
    %c0_1 = arith.constant 0 : index
    %c0_2 = arith.constant 0 : index
    %1 = vector.load %arg2[%c0_1, %c0_2] : memref<8x256xf32, #tpu.memory_space<vmem>>, vector<8x256xf32>
    %2 = arith.subf %0, %1 : vector<8x256xf32>
    %c255_i32 = arith.constant 255 : i32
    %3 = tpu.dynamic_rotate %2 by %c255_i32 dim 1 : vector<8x256xf32>, i32 -> vector<8x256xf32>
    %c240_i32 = arith.constant 240 : i32
    %4 = tpu.dynamic_rotate %2 by %c240_i32 dim 1 : vector<8x256xf32>, i32 -> vector<8x256xf32>
    %c0_3 = arith.constant 0 : index
    %c0_4 = arith.constant 0 : index
    %5 = vector.load %arg3[%c0_3, %c0_4] : memref<2x256xf32, #tpu.memory_space<vmem>>, vector<1x256xf32>
    %c1 = arith.constant 1 : index
    %c0_5 = arith.constant 0 : index
    %6 = vector.load %arg3[%c1, %c0_5] : memref<2x256xf32, #tpu.memory_space<vmem>>, vector<1x256xf32>
    %7 = arith.subf %3, %2 : vector<8x256xf32>
    %8 = vector.broadcast %5 : vector<1x256xf32> to vector<8x256xf32>
    %9 = arith.mulf %7, %8 : vector<8x256xf32>
    %10 = arith.subf %4, %2 : vector<8x256xf32>
    %11 = vector.broadcast %6 : vector<1x256xf32> to vector<8x256xf32>
    %12 = arith.mulf %10, %11 : vector<8x256xf32>
    %13 = math.absf %9 : vector<8x256xf32>
    %14 = math.absf %12 : vector<8x256xf32>
    %15 = arith.addf %13, %14 : vector<8x256xf32>
    %16 = vector.shape_cast %15 : vector<8x256xf32> to vector<1x8x256xf32>
    %cst = arith.constant dense<0.000000e+00> : vector<1xf32>
    %17 = vector.multi_reduction <add>, %16, %cst [1, 2] : vector<1x8x256xf32> to vector<1xf32>
    %18 = vector.shape_cast %17 : vector<1xf32> to vector<1x1x1xf32>
    %19 = vector.extract %18[0, 0, 0] : f32 from vector<1x1x1xf32>
    %c0_i32 = arith.constant 0 : i32
    %20 = arith.cmpi eq, %arg0, %c0_i32 : i32
    %21 = arith.extui %20 : i1 to i32
    %c0_i32_6 = arith.constant 0 : i32
    %22 = arith.cmpi ne, %21, %c0_i32_6 : i32
    scf.if %22 {
      %cst_13 = arith.constant 0.000000e+00 : f32
      %c0_14 = arith.constant 0 : index
      %c0_15 = arith.constant 0 : index
      %29 = memref.load %arg5[%c0_14, %c0_15] : memref<1x1xf32, #tpu.memory_space<smem>>
      memref.store %cst_13, %arg5[%c0_14, %c0_15] : memref<1x1xf32, #tpu.memory_space<smem>>
    } else {
    }
    %c0_7 = arith.constant 0 : index
    %c0_8 = arith.constant 0 : index
    %23 = memref.load %arg5[%c0_7, %c0_8] : memref<1x1xf32, #tpu.memory_space<smem>>
    %24 = arith.addf %23, %19 : f32
    %c0_9 = arith.constant 0 : index
    %c0_10 = arith.constant 0 : index
    %25 = memref.load %arg5[%c0_9, %c0_10] : memref<1x1xf32, #tpu.memory_space<smem>>
    memref.store %24, %arg5[%c0_9, %c0_10] : memref<1x1xf32, #tpu.memory_space<smem>>
    %c0_i32_11 = arith.constant 0 : i32
    %26 = arith.cmpi eq, %arg0, %c0_i32_11 : i32
    %27 = arith.extui %26 : i1 to i32
    %c0_i32_12 = arith.constant 0 : i32
    %28 = arith.cmpi ne, %27, %c0_i32_12 : i32
    scf.if %28 {
      %c0_13 = arith.constant 0 : index
      %c0_14 = arith.constant 0 : index
      %29 = memref.load %arg5[%c0_13, %c0_14] : memref<1x1xf32, #tpu.memory_space<smem>>
      %cst_15 = arith.constant 2.44140625E-4 : f32
      %30 = arith.mulf %29, %cst_15 : f32
      %c0_16 = arith.constant 0 : index
      %c0_17 = arith.constant 0 : index
      %31 = memref.load %arg4[%c0_16, %c0_17] : memref<1x1xf32, #tpu.memory_space<smem>>
      memref.store %30, %arg4[%c0_16, %c0_17] : memref<1x1xf32, #tpu.memory_space<smem>>
    } else {
    }
    return
  }
  func.func @transform_0(%arg0: i32) -> (i32, i32) {
    %c0_i32 = arith.constant 0 : i32
    %c0_i32_0 = arith.constant 0 : i32
    return %arg0, %c0_i32 : i32, i32
  }
  func.func @transform_1(%arg0: i32) -> (i32, i32) {
    %c0_i32 = arith.constant 0 : i32
    %c0_i32_0 = arith.constant 0 : i32
    return %arg0, %c0_i32 : i32, i32
  }
  func.func @transform_2(%arg0: i32) -> (i32, i32) {
    %c0_i32 = arith.constant 0 : i32
    %c0_i32_0 = arith.constant 0 : i32
    %c0_i32_1 = arith.constant 0 : i32
    return %c0_i32, %c0_i32_0 : i32, i32
  }
  func.func @transform_3(%arg0: i32) -> (i32, i32) {
    %c0_i32 = arith.constant 0 : i32
    %c0_i32_0 = arith.constant 0 : i32
    %c0_i32_1 = arith.constant 0 : i32
    return %c0_i32, %c0_i32_0 : i32, i32
  }
}

</mosaic_0001>

<llo_original>
// kernel: tpu_custom_call.1
$region0: #{tpu_custom_call.1}
  #allocation0 [shape = 'u32[]', space=smem, size = 0x4, offset = 0x4, fixed_abs, tag = 'smem constant byte address 0x4 - core index']
  #allocation1 [shape = 'u32[72,128]{1,0:T(1,128)}', space=vmem, size = 0x9000, scoped, tag = 'internal scratch']
  #allocation2 [shape = 'f32[1,1]{1,0:T(1,128)}', space=smem, size = 0x200, scoped, tag = 'scratch operand']
  %s0 = inlined_call_operand.hbm [shape: f32[8,256], index: 0, kind: input, shape index: {}]
  %s1 = inlined_call_operand.hbm [shape: f32[8,256], index: 1, kind: input, shape index: {}]
  %s2 = inlined_call_operand.hbm [shape: f32[2,256], index: 2, kind: input, shape index: {}]
  %s3 = inlined_call_operand.hbm [shape: f32[1,1], index: 3, kind: output, shape index: {}]
  %s4 = sld [smem:[#allocation0]]
  $region42: #{tpu_custom_call.1} parent=0
    _
  %s6 = ssub.s32 1, %s4
  %s7 = scalar_select 0, %s6, %s4
  $region1: #{tpu_custom_call.1} parent=0
    #allocation3 [shape = 'u8[8192]{0}', space=vmem, size = 0x2000, scoped, tag = 'input window, operand 0, single buffered']
    #allocation4 [shape = 's32[1]{0}', space=sflag, size = 0x4, scoped, tag = 'scoped memory for tpu_custom_call.1']
    #allocation5 [shape = 's32[1]{0}', space=sflag, size = 0x4, scoped, tag = 'scoped memory for tpu_custom_call.1']
    #allocation6 [shape = 'u8[8192]{0}', space=vmem, size = 0x2000, scoped, tag = 'input window, operand 1, single buffered']
    #allocation7 [shape = 's32[1]{0}', space=sflag, size = 0x4, scoped, tag = 'scoped memory for tpu_custom_call.1']
    #allocation8 [shape = 'u8[2048]{0}', space=vmem, size = 0x800, scoped, tag = 'input window, operand 2, single buffered']
    #allocation9 [shape = 'u8[512]{0}', space=smem, size = 0x200, scoped, tag = 'output window, operand 0, single buffered']
    %8 = vsyncpa [#allocation4], 0
    %9 = vsyncpa [#allocation7], 0
    %10 = vsyncpa [#allocation5], 0
    // Predicated region
    $region2: #{tpu_custom_call.1} parent=1 // pred_check
      _
    $region3: #{tpu_custom_call.1} parent=1 // pred_check_branch
      %12 = sbr.rel (0) target = $region5
    $region4: #{tpu_custom_call.1} parent=1 // pred_region
      %14 = vsyncadd [#allocation4], 0
      %s16 = sshll.u32 %s0, 4
      %s17 = int_to_ptr.hbm [resolvable:$true] %s16
      %s18 = sshll.u32 [#allocation3], 4
      %s19 = int_to_ptr.vmem [resolvable:$true] %s18
      %21 = dma.hbm_to_vmem [thread:$0]  %s17, 256, %s19, [#allocation4]
    $region5: #{tpu_custom_call.1} parent=1 // pred_fallthru
      _
    // Predicated region
    $region6: #{tpu_custom_call.1} parent=1 // pred_check
      _
    $region7: #{tpu_custom_call.1} parent=1 // pred_check_branch
      %23 = sbr.rel (0) target = $region9
    $region8: #{tpu_custom_call.1} parent=1 // pred_region
      %25 = vsyncadd [#allocation7], 0
      %s27 = sshll.u32 %s1, 4
      %s28 = int_to_ptr.hbm [resolvable:$true] %s27
      %s29 = sshll.u32 [#allocation6], 4
      %s30 = int_to_ptr.vmem [resolvable:$true] %s29
      %32 = dma.hbm_to_vmem [thread:$0]  %s28, 256, %s30, [#allocation7]
    $region9: #{tpu_custom_call.1} parent=1 // pred_fallthru
      _
    // Predicated region
    $region10: #{tpu_custom_call.1} parent=1 // pred_check
      _
    $region11: #{tpu_custom_call.1} parent=1 // pred_check_branch
      %34 = sbr.rel (0) target = $region13
    $region12: #{tpu_custom_call.1} parent=1 // pred_region
      %36 = vsyncadd [#allocation7], 0
      %s38 = sshll.u32 %s2, 4
      %s39 = int_to_ptr.hbm [resolvable:$true] %s38
      %s40 = sshll.u32 [#allocation8], 4
      %s41 = int_to_ptr.vmem [resolvable:$true] %s40
      %43 = dma.hbm_to_vmem [thread:$0]  %s39, 64, %s41, [#allocation7]
    $region13: #{tpu_custom_call.1} parent=1 // pred_fallthru
      _
    // Predicated region
    $region14: #{tpu_custom_call.1} parent=1 // pred_check
      _
    $region15: #{tpu_custom_call.1} parent=1 // pred_check_branch
      %45 = sbr.rel (0) target = $region17
    $region16: #{tpu_custom_call.1} parent=1 // pred_region
      %47 = dma.done [#allocation4], 256
    $region17: #{tpu_custom_call.1} parent=1 // pred_fallthru
      _
    // Predicated region
    $region18: #{tpu_custom_call.1} parent=1 // pred_check
      _
    $region19: #{tpu_custom_call.1} parent=1 // pred_check_branch
      %49 = sbr.rel (0) target = $region21
    $region20: #{tpu_custom_call.1} parent=1 // pred_region
      %51 = dma.done [#allocation7], 256
    $region21: #{tpu_custom_call.1} parent=1 // pred_fallthru
      _
    // Predicated region
    $region22: #{tpu_custom_call.1} parent=1 // pred_check
      _
    $region23: #{tpu_custom_call.1} parent=1 // pred_check_branch
      %53 = sbr.rel (0) target = $region25
    $region24: #{tpu_custom_call.1} parent=1 // pred_region
      %55 = dma.done [#allocation7], 64
    $region25: #{tpu_custom_call.1} parent=1 // pred_fallthru
      _
    %v56 = vld [vmem:[#allocation3] sm:$0xff]
    %v57 = vld [vmem:[#allocation3 + $0x8] sm:$0xff]
    %v58 = vld [vmem:[#allocation6] sm:$0xff]
    %v59 = vld [vmem:[#allocation6 + $0x8] sm:$0xff]
    %v60 = vsub.f32 %v56, %v58
    %v61 = vsub.f32 %v57, %v59
    %62 = vrot.lane.b32.xlu0 %v60, 127
    %v63 = vpop.permute.xlu0 %62
    %64 = vrot.lane.b32.xlu0 %v61, 127
    %v65 = vpop.permute.xlu0 %64
    %v66 = vlaneseq
    %v67 = vand.u32 %v66, 127
    %vm68 = vcmp.lt.s32.totalorder %v67, 127
    %v69 = vsel %vm68, %v63, %v65
    %v70 = vsel %vm68, %v65, %v63
    %71 = vrot.lane.b32.xlu0 %v60, 112
    %v72 = vpop.permute.xlu0 %71
    %73 = vrot.lane.b32.xlu0 %v61, 112
    %v74 = vpop.permute.xlu0 %73
    %vm75 = vcmp.lt.s32.totalorder %v67, 112
    %v76 = vsel %vm75, %v72, %v74
    %v77 = vsel %vm75, %v74, %v72
    %v78 = vld [vmem:[#allocation8] ss:$2 sm:$0x3]
    %s79 = scalar_lea.vmem [#allocation8], 1
    %v80 = vld [vmem:[%s79] ss:$2 sm:$0x3]
    %v81 = vsub.f32 %v69, %v60
    %v82 = vsub.f32 %v70, %v61
    %v84 = vperm.slane %v78, 0
    %v85 = vperm.slane %v78, 1
    %v88 = vmul.f32 %v81, %v84
    %v89 = vmul.f32 %v82, %v85
    %v90 = vsub.f32 %v76, %v60
    %v91 = vsub.f32 %v77, %v61
    %v93 = vperm.slane %v80, 0
    %v94 = vperm.slane %v80, 1
    %v97 = vmul.f32 %v90, %v93
    %v98 = vmul.f32 %v91, %v94
    %v99 = vand.u32 2147483647, %v88
    %v100 = vand.u32 2147483647, %v89
    %v101 = vand.u32 2147483647, %v97
    %v102 = vand.u32 2147483647, %v98
    %v103 = vadd.f32 %v99, %v101
    %v104 = vadd.f32 %v100, %v102
    %v105 = vadd.f32 %v103, %v104
    %106 = vadd.xlane.f32.xlu0 %v105
    %v107 = vpop.xlane.xlu0 %106
    %v108 = vrot.slane %v107, 4
    %v109 = vadd.f32 %v107, %v108
    %v110 = vrot.slane %v109, 2
    %v111 = vadd.f32 %v109, %v110
    %v112 = vrot.slane %v111, 1
    %v113 = vadd.f32 %v111, %v112
    %s114 = vtos %v113
    %p115 = scmp.eq.s32.totalorder 0, 0
    // Predicated region
    $region26: #{tpu_custom_call.1} parent=1 // pred_check
      %p116 = pneg %p115
    $region27: #{tpu_custom_call.1} parent=1 // pred_check_branch
      %118 = sbr.rel (%p116) target = $region29
    $region28: #{tpu_custom_call.1} parent=1 // pred_region
      %s119 = scalar_lea.smem [#allocation2], 0
      %120 = sst [smem:[%s119]] 0.0
    $region29: #{tpu_custom_call.1} parent=1 // pred_fallthru
      _
    %s121 = sld [smem:[#allocation2]]
    %s122 = sadd.f32 %s121, %s114
    %s123 = scalar_lea.smem [#allocation2], 0
    %124 = sst [smem:[%s123]] %s122
    // Predicated region
    $region30: #{tpu_custom_call.1} parent=1 // pred_check
      %p125 = pneg %p115
    $region31: #{tpu_custom_call.1} parent=1 // pred_check_branch
      %127 = sbr.rel (%p125) target = $region33
    $region32: #{tpu_custom_call.1} parent=1 // pred_region
      %s128 = sld [smem:[#allocation2]]
      %s129 = smul.f32 %s128, 0.00024414063
      %s130 = scalar_lea.smem [#allocation9], 0
      %131 = sst [smem:[%s130]] %s129
    $region33: #{tpu_custom_call.1} parent=1 // pred_fallthru
      _
    // Predicated region
    $region34: #{tpu_custom_call.1} parent=1 // pred_check
      _
    $region35: #{tpu_custom_call.1} parent=1 // pred_check_branch
      %133 = sbr.rel (0) target = $region37
    $region36: #{tpu_custom_call.1} parent=1 // pred_region
      %135 = vsyncadd [#allocation5], 0
      %s137 = sshll.u32 %s3, 4
      %s138 = int_to_ptr.hbm [resolvable:$true] %s137
      %140 = dma.smem_to_hbm [#allocation9], 16, %s138, [#allocation5]
    $region37: #{tpu_custom_call.1} parent=1 // pred_fallthru
      _
    // Predicated region
    $region38: #{tpu_custom_call.1} parent=1 // pred_check
      _
    $region39: #{tpu_custom_call.1} parent=1 // pred_check_branch
      %142 = sbr.rel (0) target = $region41
    $region40: #{tpu_custom_call.1} parent=1 // pred_region
      %144 = dma.done [#allocation5], 16
    $region41: #{tpu_custom_call.1} parent=1 // pred_fallthru
      _
    %145 = sfence
    %146 = vsyncpa [#allocation4], 1
    %147 = vsyncpa [#allocation7], 1
    %148 = vsyncpa [#allocation5], 1

</llo_original>
